<compile_context>
chip_gen: v7x
topology: tpu7x:2x2x1
jax: 0.10.0
libtpu: 0.0.40
codegen_flags: <defaults>
</compile_context>

<pallas_src>
import functools

import jax
import jax.numpy as jnp
from jax import lax
from jax.experimental import pallas as pl
from jax.experimental.pallas import tpu as pltpu

_LANES = 128
_TARGET_BLOCK_F32_BYTES = 2 << 20     # ~2 MiB f32 working block per grid step
_VMEM_CAP_BYTES = 48 << 20            # stay under v7x's 64 MiB VMEM per TC


def _round_up(x, m):
    return ((x + m - 1) // m) * m


def _focal_loss_kernel(logits_ref, tgt_ref, sum_ref, cnt_ref, *,
                       alpha, gamma, ignore_index):
    n = pl.program_id(1)
    r = pl.program_id(2)

    # First visit of this split's resident accumulator -> zero it.
    @pl.when((n == 0) & (r == 0))
    def _():
        sum_ref[...] = jnp.zeros_like(sum_ref)
        cnt_ref[...] = jnp.zeros_like(cnt_ref)

    x = logits_ref[0].astype(jnp.float32)      # (C, SR, 128)
    t = tgt_ref[0, 0]                          # (SR, 128) int32

    # Class axis (axis 0) spans separate vregs: every reduction below is a
    # cross-vreg VPU op and all per-position results fill (8,128) vregs.
    m = jnp.max(x, axis=0)                     # (SR, 128)
    e = jnp.exp(x - m[None])                   # (C, SR, 128)   EUP
    denom = jnp.sum(e, axis=0)                 # (SR, 128)  sum_c exp(x_c - m)

    cls = lax.broadcasted_iota(jnp.int32, x.shape, 0)
    hit = cls == t[None]                       # one-hot of the target class
    picked = jnp.sum(jnp.where(hit, x, 0.0), axis=0)     # target logit
    picked_e = jnp.sum(jnp.where(hit, e, 0.0), axis=0)   # exp(target - m)

    valid = t != ignore_index                  # (SR, 128) bool
    ce = jnp.log(denom) + (m - picked)         # per-position cross entropy
    pt = picked_e / denom                      # == exp(-ce); reuses e (no 2nd exp)
    omp = 1.0 - pt
    # Integer-power fast path (gamma=2.0 default): plain multiplies, and no
    # pow(0, gamma) NaN-gradient hazard for a future custom VJP.
    if float(gamma) == int(gamma):
        mod = lax.integer_pow(omp, int(gamma))
    else:
        mod = omp ** jnp.float32(gamma)
    focal = jnp.where(valid, alpha * mod * ce, 0.0)

    # Vector-shaped accumulation: pure VALU adds; nothing mixes positions
    # before the valid mask, so padded / garbage lanes contribute exactly 0.
    sum_ref[...] += focal[None]
    cnt_ref[...] += valid.astype(jnp.float32)[None]


def focal_loss(logits_nchw, target_nhw, *, alpha=0.25, gamma=2.0,
               ignore_index=-100):
    """Replicates FocalLoss.forward for 4-D NCHW logits and NHW int targets."""
    N, C, H, W = logits_nchw.shape
    HW = H * W
    itemsize = jnp.dtype(logits_nchw.dtype).itemsize   # bf16 logits welcome

    logits = logits_nchw.reshape(N, C, HW)
    target = target_nhw.reshape(N, 1, HW).astype(jnp.int32)

    # C-aware row-tile: keep the f32 working block around 2 MiB.
    rows_target = max(8, (_TARGET_BLOCK_F32_BYTES // (4 * C * _LANES)) // 8 * 8)

    rows = (HW + _LANES - 1) // _LANES          # position rows of 128 lanes
    if rows <= rows_target:
        sr = rows                               # single row-block (== full dim)
        rows_padded = rows
    else:
        sr = None
        for cand in range(rows_target, 7, -8):  # largest multiple-of-8 divisor
            if rows % cand == 0:
                sr = cand
                break
        if sr is None:
            sr = rows_target                    # rare: no divisor -> pad rows
        rows_padded = _round_up(rows, sr)

    hw_padded = rows_padded * _LANES
    if hw_padded != HW:
        # Padded positions carry ignore_index targets, so they contribute
        # nothing.  Only hit when H*W is not a multiple of 128 (or the rare
        # no-divisor fallback); the common case pads nothing and avoids the
        # full-HBM-copy a logits pad would cost.
        logits = jnp.pad(logits, ((0, 0), (0, 0), (0, hw_padded - HW)))
        target = jnp.pad(target, ((0, 0), (0, 0), (0, hw_padded - HW)),
                         constant_values=ignore_index)

    # Free row-major reshapes: 8 consecutive position rows fill the 8 sublanes.
    logits = logits.reshape(N, C, rows_padded, _LANES)
    target = target.reshape(N, 1, rows_padded, _LANES)

    blocks_total = rows_padded // sr
    # Leading "parallel" split axis: v7x's two TensorCores each take half the
    # row-blocks; harmless (serial loop of <=2) on v5e/v6e.
    num_splits = 2 if (blocks_total >= 2 and blocks_total % 2 == 0) else 1
    bps = blocks_total // num_splits
    grid = (num_splits, N, bps)

    def in_map(s, n, r):
        return (n, 0, s * bps + r, 0)

    kernel = functools.partial(_focal_loss_kernel, alpha=alpha, gamma=gamma,
                               ignore_index=ignore_index)

    # Explicit scoped-VMEM budget: double-buffered inputs + a few f32 copies
    # of the block for elementwise temporaries + resident accumulators,
    # capped for v7x.
    block_f32 = 4 * C * sr * _LANES
    in_bytes = C * sr * _LANES * itemsize + sr * _LANES * 4
    out_bytes = 2 * sr * _LANES * 4
    vmem_limit = int(min(_VMEM_CAP_BYTES,
                         max(32 << 20,
                             2 * in_bytes + 8 * block_f32 + 2 * out_bytes
                             + (2 << 20))))
    # TODO(synk): very large class counts (C >~ 2048) would need an
    # online-softmax tiling over the class axis to keep blocks in VMEM.

    focal_acc, valid_acc = pl.pallas_call(
        kernel,
        out_shape=(
            jax.ShapeDtypeStruct((num_splits, sr, _LANES), jnp.float32),
            jax.ShapeDtypeStruct((num_splits, sr, _LANES), jnp.float32),
        ),
        grid_spec=pltpu.PrefetchScalarGridSpec(
            num_scalar_prefetch=0,
            grid=grid,
            in_specs=[
                pl.BlockSpec((1, C, sr, _LANES), in_map),
                pl.BlockSpec((1, 1, sr, _LANES), in_map),
            ],
            out_specs=[
                pl.BlockSpec((1, sr, _LANES), lambda s, n, r: (s, 0, 0)),
                pl.BlockSpec((1, sr, _LANES), lambda s, n, r: (s, 0, 0)),
            ],
        ),
        compiler_params=pltpu.CompilerParams(
            dimension_semantics=("parallel", "arbitrary", "arbitrary"),
            vmem_limit_bytes=vmem_limit),
    )(logits, target)

    # Tiny final reduction + masked mean (sum / count_nonzero(t != ignore)).
    # NOTE: all-ignored input yields NaN/Inf, matching PyTorch behavior.
    return jnp.sum(focal_acc) / jnp.sum(valid_acc)


def _reference(logits_nchw, target_nhw, alpha=0.25, gamma=2.0,
               ignore_index=-100):
    # pure-JAX reference of the PyTorch forward
    logp = jax.nn.log_softmax(logits_nchw.astype(jnp.float32), axis=1)
    t = target_nhw
    valid = t != ignore_index
    t_safe = jnp.where(valid, t, 0)
    picked = jnp.take_along_axis(logp, t_safe[:, None, :, :], axis=1)[:, 0]
    ce = jnp.where(valid, -picked, 0.0)
    pt = jnp.exp(-ce)
    focal = alpha * (1.0 - pt) ** gamma * ce
    focal = jnp.where(valid, focal, 0.0)
    return jnp.sum(focal) / jnp.sum(valid).astype(jnp.float32)


if __name__ == "__main__":
    key = jax.random.PRNGKey(0)
    k1, k2, k3 = jax.random.split(key, 3)

    N, C, H, W = 2, 4, 16, 16
    ignore_index = -100

    logits = jax.random.normal(k1, (N, C, H, W), dtype=jnp.float32)
    target = jax.random.randint(k2, (N, H, W), 0, C, dtype=jnp.int32)
    # sprinkle some ignored positions
    ignore_mask = jax.random.uniform(k3, (N, H, W)) < 0.1
    target = jnp.where(ignore_mask, ignore_index, target)

    out = focal_loss(logits, target, alpha=0.25, gamma=2.0,
                     ignore_index=ignore_index)
    out = jax.block_until_ready(out)

    ref = _reference(logits, target, alpha=0.25, gamma=2.0,
                     ignore_index=ignore_index)
    assert jnp.allclose(out, ref, rtol=1e-4, atol=1e-5), (out, ref)

    print("KERNEL_OK")
</pallas_src>

<mosaic_0001>
module attributes {stable_mosaic.version = 11 : i64} {
  func.func @_focal_loss_kernel(%arg0: i32, %arg1: i32, %arg2: i32, %arg3: memref<1x4x2x128xf32, #tpu.memory_space<vmem>>, %arg4: memref<1x1x2x128xi32, #tpu.memory_space<vmem>>, %arg5: memref<1x2x128xf32, #tpu.memory_space<vmem>>, %arg6: memref<1x2x128xf32, #tpu.memory_space<vmem>>) attributes {dimension_semantics = [#tpu.dimension_semantics<parallel>, #tpu.dimension_semantics<arbitrary>, #tpu.dimension_semantics<arbitrary>], iteration_bounds = array<i64: 1, 2, 1>, scalar_prefetch = 0 : i64, scratch_operands = 0 : i64, tpu.core_type = #tpu.core_type<tc>, window_params = [{transform_indices = @transform_0, window_bounds = array<i64: 1, 4, 2, 128>}, {transform_indices = @transform_1, window_bounds = array<i64: 1, 1, 2, 128>}, {transform_indices = @transform_2, window_bounds = array<i64: 1, 2, 128>}, {transform_indices = @transform_3, window_bounds = array<i64: 1, 2, 128>}]} {
    %c0_i32 = arith.constant 0 : i32
    %0 = arith.cmpi eq, %arg1, %c0_i32 : i32
    %c0_i32_0 = arith.constant 0 : i32
    %1 = arith.cmpi eq, %arg2, %c0_i32_0 : i32
    %2 = arith.andi %0, %1 : i1
    %3 = arith.extui %2 : i1 to i32
    %c0_i32_1 = arith.constant 0 : i32
    %4 = arith.cmpi ne, %3, %c0_i32_1 : i32
    scf.if %4 {
      %cst_29 = arith.constant 0.000000e+00 : f32
      %49 = vector.broadcast %cst_29 : f32 to vector<1x2x128xf32>
      %c0_30 = arith.constant 0 : index
      %c0_31 = arith.constant 0 : index
      %c0_32 = arith.constant 0 : index
      %50 = vector.load %arg5[%c0_30, %c0_31, %c0_32] : memref<1x2x128xf32, #tpu.memory_space<vmem>>, vector<1x2x128xf32>
      tpu.vector_store %arg5[%c0_30, %c0_31, %c0_32], %49 {strides = array<i32>} : memref<1x2x128xf32, #tpu.memory_space<vmem>>, vector<1x2x128xf32>,
      %cst_33 = arith.constant 0.000000e+00 : f32
      %51 = vector.broadcast %cst_33 : f32 to vector<1x2x128xf32>
      %c0_34 = arith.constant 0 : index
      %c0_35 = arith.constant 0 : index
      %c0_36 = arith.constant 0 : index
      %52 = vector.load %arg6[%c0_34, %c0_35, %c0_36] : memref<1x2x128xf32, #tpu.memory_space<vmem>>, vector<1x2x128xf32>
      tpu.vector_store %arg6[%c0_34, %c0_35, %c0_36], %51 {strides = array<i32>} : memref<1x2x128xf32, #tpu.memory_space<vmem>>, vector<1x2x128xf32>,
    } else {
    }
    %c0 = arith.constant 0 : index
    %c0_2 = arith.constant 0 : index
    %c0_3 = arith.constant 0 : index
    %c0_4 = arith.constant 0 : index
    %5 = vector.load %arg3[%c0, %c0_2, %c0_3, %c0_4] : memref<1x4x2x128xf32, #tpu.memory_space<vmem>>, vector<1x4x2x128xf32>
    %6 = vector.shape_cast %5 : vector<1x4x2x128xf32> to vector<4x2x128xf32>
    %c0_5 = arith.constant 0 : index
    %c0_6 = arith.constant 0 : index
    %c0_7 = arith.constant 0 : index
    %c0_8 = arith.constant 0 : index
    %7 = vector.load %arg4[%c0_5, %c0_6, %c0_7, %c0_8] : memref<1x1x2x128xi32, #tpu.memory_space<vmem>>, vector<1x1x2x128xi32>
    %8 = vector.shape_cast %7 : vector<1x1x2x128xi32> to vector<2x128xi32>
    %cst = arith.constant dense<0xFF800000> : vector<2x128xf32>
    %9 = vector.multi_reduction <maximumf>, %6, %cst [0] : vector<4x2x128xf32> to vector<2x128xf32>
    %10 = vector.shape_cast %9 : vector<2x128xf32> to vector<1x2x128xf32>
    %11 = vector.broadcast %10 : vector<1x2x128xf32> to vector<4x2x128xf32>
    %12 = arith.subf %6, %11 : vector<4x2x128xf32>
    %13 = math.exp %12 : vector<4x2x128xf32>
    %cst_9 = arith.constant dense<0.000000e+00> : vector<2x128xf32>
    %14 = vector.multi_reduction <add>, %13, %cst_9 [0] : vector<4x2x128xf32> to vector<2x128xf32>
    %15 = tpu.iota {dimensions = array<i32: 0>} : vector<4x2x128xi32>
    %16 = vector.shape_cast %8 : vector<2x128xi32> to vector<1x2x128xi32>
    %17 = vector.broadcast %16 : vector<1x2x128xi32> to vector<4x2x128xi32>
    %18 = arith.cmpi eq, %15, %17 : vector<4x2x128xi32>
    %cst_10 = arith.constant 0.000000e+00 : f32
    %19 = vector.broadcast %cst_10 : f32 to vector<4x2x128xf32>
    %20 = arith.select %18, %6, %19 : vector<4x2x128xi1>, vector<4x2x128xf32>
    %cst_11 = arith.constant dense<0.000000e+00> : vector<2x128xf32>
    %21 = vector.multi_reduction <add>, %20, %cst_11 [0] : vector<4x2x128xf32> to vector<2x128xf32>
    %cst_12 = arith.constant 0.000000e+00 : f32
    %22 = vector.broadcast %cst_12 : f32 to vector<4x2x128xf32>
    %23 = arith.select %18, %13, %22 : vector<4x2x128xi1>, vector<4x2x128xf32>
    %cst_13 = arith.constant dense<0.000000e+00> : vector<2x128xf32>
    %24 = vector.multi_reduction <add>, %23, %cst_13 [0] : vector<4x2x128xf32> to vector<2x128xf32>
    %c-100_i32 = arith.constant -100 : i32
    %25 = vector.broadcast %c-100_i32 : i32 to vector<2x128xi32>
    %26 = arith.cmpi ne, %8, %25 : vector<2x128xi32>
    %27 = math.log %14 : vector<2x128xf32>
    %28 = arith.subf %9, %21 : vector<2x128xf32>
    %29 = arith.addf %27, %28 : vector<2x128xf32>
    %30 = arith.divf %24, %14 : vector<2x128xf32>
    %cst_14 = arith.constant 1.000000e+00 : f32
    %31 = vector.broadcast %cst_14 : f32 to vector<2x128xf32>
    %32 = arith.subf %31, %30 : vector<2x128xf32>
    %33 = arith.mulf %32, %32 : vector<2x128xf32>
    %cst_15 = arith.constant 2.500000e-01 : f32
    %34 = vector.broadcast %cst_15 : f32 to vector<2x128xf32>
    %35 = arith.mulf %34, %33 : vector<2x128xf32>
    %36 = arith.mulf %35, %29 : vector<2x128xf32>
    %cst_16 = arith.constant 0.000000e+00 : f32
    %37 = vector.broadcast %cst_16 : f32 to vector<2x128xf32>
    %38 = arith.select %26, %36, %37 : vector<2x128xi1>, vector<2x128xf32>
    %c0_17 = arith.constant 0 : index
    %c0_18 = arith.constant 0 : index
    %c0_19 = arith.constant 0 : index
    %39 = vector.load %arg5[%c0_17, %c0_18, %c0_19] : memref<1x2x128xf32, #tpu.memory_space<vmem>>, vector<1x2x128xf32>
    %40 = vector.shape_cast %38 : vector<2x128xf32> to vector<1x2x128xf32>
    %41 = arith.addf %39, %40 : vector<1x2x128xf32>
    %c0_20 = arith.constant 0 : index
    %c0_21 = arith.constant 0 : index
    %c0_22 = arith.constant 0 : index
    %42 = vector.load %arg5[%c0_20, %c0_21, %c0_22] : memref<1x2x128xf32, #tpu.memory_space<vmem>>, vector<1x2x128xf32>
    tpu.vector_store %arg5[%c0_20, %c0_21, %c0_22], %41 {strides = array<i32>} : memref<1x2x128xf32, #tpu.memory_space<vmem>>, vector<1x2x128xf32>,
    %c0_23 = arith.constant 0 : index
    %c0_24 = arith.constant 0 : index
    %c0_25 = arith.constant 0 : index
    %43 = vector.load %arg6[%c0_23, %c0_24, %c0_25] : memref<1x2x128xf32, #tpu.memory_space<vmem>>, vector<1x2x128xf32>
    %44 = arith.extui %26 : vector<2x128xi1> to vector<2x128xi32>
    %45 = arith.sitofp %44 : vector<2x128xi32> to vector<2x128xf32>
    %46 = vector.shape_cast %45 : vector<2x128xf32> to vector<1x2x128xf32>
    %47 = arith.addf %43, %46 : vector<1x2x128xf32>
    %c0_26 = arith.constant 0 : index
    %c0_27 = arith.constant 0 : index
    %c0_28 = arith.constant 0 : index
    %48 = vector.load %arg6[%c0_26, %c0_27, %c0_28] : memref<1x2x128xf32, #tpu.memory_space<vmem>>, vector<1x2x128xf32>
    tpu.vector_store %arg6[%c0_26, %c0_27, %c0_28], %47 {strides = array<i32>} : memref<1x2x128xf32, #tpu.memory_space<vmem>>, vector<1x2x128xf32>,
    return
  }
  func.func @transform_0(%arg0: i32, %arg1: i32, %arg2: i32) -> (i32, i32, i32, i32) {
    %c1_i32 = arith.constant 1 : i32
    %0 = arith.muli %arg0, %c1_i32 : i32
    %1 = arith.addi %0, %arg2 : i32
    %c0_i32 = arith.constant 0 : i32
    %c0_i32_0 = arith.constant 0 : i32
    %c0_i32_1 = arith.constant 0 : i32
    return %arg1, %c0_i32, %1, %c0_i32_0 : i32, i32, i32, i32
  }
  func.func @transform_1(%arg0: i32, %arg1: i32, %arg2: i32) -> (i32, i32, i32, i32) {
    %c1_i32 = arith.constant 1 : i32
    %0 = arith.muli %arg0, %c1_i32 : i32
    %1 = arith.addi %0, %arg2 : i32
    %c0_i32 = arith.constant 0 : i32
    %c0_i32_0 = arith.constant 0 : i32
    %c0_i32_1 = arith.constant 0 : i32
    return %arg1, %c0_i32, %1, %c0_i32_0 : i32, i32, i32, i32
  }
  func.func @transform_2(%arg0: i32, %arg1: i32, %arg2: i32) -> (i32, i32, i32) {
    %c0_i32 = arith.constant 0 : i32
    %c0_i32_0 = arith.constant 0 : i32
    %c0_i32_1 = arith.constant 0 : i32
    return %arg0, %c0_i32, %c0_i32_0 : i32, i32, i32
  }
  func.func @transform_3(%arg0: i32, %arg1: i32, %arg2: i32) -> (i32, i32, i32) {
    %c0_i32 = arith.constant 0 : i32
    %c0_i32_0 = arith.constant 0 : i32
    %c0_i32_1 = arith.constant 0 : i32
    return %arg0, %c0_i32, %c0_i32_0 : i32, i32, i32
  }
}

</mosaic_0001>

<llo_original>
// kernel: tpu_custom_call.1
$region0: #{tpu_custom_call.1}
  #allocation0 [shape = 'u32[]', space=smem, size = 0x4, offset = 0x4, fixed_abs, tag = 'smem constant byte address 0x4 - core index']
  #allocation1 [shape = 'u32[144,128]{1,0:T(1,128)}', space=vmem, size = 0x12000, scoped, tag = 'internal scratch']
  %s0 = inlined_call_operand.hbm [shape: f32[2,4,2,128], index: 0, kind: input, shape index: {}]
  %s1 = inlined_call_operand.hbm [shape: s32[2,1,2,128], index: 1, kind: input, shape index: {}]
  %s2 = inlined_call_operand.hbm [shape: f32[1,2,128], index: 2, kind: output, shape index: {0}]
  %s3 = inlined_call_operand.hbm [shape: f32[1,2,128], index: 3, kind: output, shape index: {1}]
  %4 = xla_tuple %s2, %s3
  %s5 = sld [smem:[#allocation0]]
  $region61: #{tpu_custom_call.1} parent=0
    _
  %s7 = ssub.s32 1, %s5
  %s8 = scalar_select 0, %s7, %s5
  $region1: #{tpu_custom_call.1} parent=0
    #allocation2 [shape = 'u8[8192]{0}', space=vmem, size = 0x2000, scoped, tag = 'input window, operand 0']
    #allocation3 [shape = 's32[2]{0}', space=sflag, size = 0x8, scoped, tag = 'scoped memory for tpu_custom_call.1']
    #allocation4 [shape = 's32[2]{0}', space=sflag, size = 0x8, scoped, tag = 'scoped memory for tpu_custom_call.1']
    #allocation5 [shape = 'u8[2048]{0}', space=vmem, size = 0x800, scoped, tag = 'input window, operand 1']
    #allocation6 [shape = 's32[2]{0}', space=sflag, size = 0x8, scoped, tag = 'scoped memory for tpu_custom_call.1']
    #allocation7 [shape = 'u8[1024]{0}', space=vmem, size = 0x400, scoped, tag = 'output window, operand 0, single buffered']
    #allocation8 [shape = 'u8[1024]{0}', space=vmem, size = 0x400, scoped, tag = 'output window, operand 1, single buffered']
    #allocation9 [shape = 's32[1]{0}', space=sflag, size = 0x4, scoped, tag = 'scoped memory for tpu_custom_call.1']
    %9 = vsyncpa [#allocation3], 0
    %s10 = scalar_lea.sflag [#allocation3], 1
    %11 = vsyncpa %s10, 0
    %12 = vsyncpa [#allocation6], 0
    %s13 = scalar_lea.sflag [#allocation6], 1
    %14 = vsyncpa %s13, 0
    %15 = vsyncpa [#allocation4], 0
    %16 = vsyncpa [#allocation9], 0
    loop: start=0, step=1, limit=4
    $region2: #{tpu_custom_call.1} parent=1 // loop_pre_header
      _
    $region3: #{tpu_custom_call.1} parent=1 // loop_header
      %s18 = sphi 0, %s22
      %p19 = scmp.ge.s32.totalorder %s18, 4
      %s25 = sphi 0, %s44
      %s26 = sphi 0, %s40
      %s27 = sphi 0, %s36
      %s28 = sphi 0, %s25
      %s29 = sphi 0, %s26
      %s30 = sphi 0, %s27
      %s31 = sphi 0, %s28
      %s32 = sphi 0, %s29
      %s33 = sphi 0, %s30
      %s51 = sphi 0, %s53
      %s54 = sphi 0, %s51
      %s55 = sphi 0, %s54
      %s71 = sphi 0, %s55
      %s81 = sphi 0, %s83
      %s84 = sphi 0, %s81
      %s85 = sphi 0, %s84
      %s101 = sphi 0, %s85
      %s107 = sphi 0, %s109
      %s110 = sphi 0, %s107
      %s111 = sphi 0, %s110
      %s127 = sphi 0, %s111
      %s133 = sphi 0, %s135
      %s136 = sphi 0, %s133
      %s137 = sphi 0, %s136
      %s153 = sphi 0, %s137
    $region4: #{tpu_custom_call.1} parent=1 // loop_header_branch
      %21 = sbr.rel (%p19) target = $region8
    $region5: #{tpu_custom_call.1} parent=1 // loop_body
      %s23 = ssub.s32 %s18, 1
      %s24 = ssub.s32 %s18, 2
      %s34 = sadd.s32 1, %s27
      %p35 = scmp.ge.s32.totalorder %s34, 1
      %s36 = scalar_select %p35, 0, %s34
      %s37 = sadd.s32 1, %s26
      %s38 = scalar_select %p35, %s37, %s26
      %p39 = scmp.ge.s32.totalorder %s38, 2
      %s40 = scalar_select %p39, 0, %s38
      %s41 = sadd.s32 1, %s25
      %s42 = scalar_select %p39, %s41, %s25
      %p43 = scmp.ge.s32.totalorder %s42, 1
      %s44 = scalar_select %p43, 0, %s42
      %s45 = sadd.s32 %s25, %s27
      %s46 = sadd.s32 %s44, %s36
      %s47 = ssub.s32 %s26, %s40
      %s48 = ssub.s32 %s45, %s46
      %s49 = sor.u32 %s47, %s48
      %p50 = scmp.eq.s32.totalorder %s49, 0
      %s52 = sadd.s32 %s51, 1
      %s53 = scalar_select %p50, %s51, %s52
      %p56 = pneg %p50
      %p57 = scmp.eq.s32.totalorder %s18, 1
      %p58 = por %p56, %p57
      %p59 = scmp.ne.s32.totalorder %s51, %s54
      %p60 = scmp.eq.s32.totalorder %s18, 0
      %p61 = por %p59, %p60
      %p62 = scmp.ne.s32.totalorder %s51, %s54
      %p63 = scmp.eq.s32.totalorder %s23, 1
      %p64 = por %p62, %p63
      %p65 = scmp.ne.s32.totalorder %s54, %s55
      %p66 = scmp.eq.s32.totalorder %s23, 0
      %p67 = por %p65, %p66
      %p68 = scmp.ne.s32.totalorder %s54, %s55
      %p69 = scmp.eq.s32.totalorder %s24, 1
      %p70 = por %p68, %p69
      %p72 = scmp.ne.s32.totalorder %s55, %s71
      %p73 = scmp.eq.s32.totalorder %s24, 0
      %p74 = por %p72, %p73
      %s75 = sadd.s32 %s25, %s27
      %s76 = sadd.s32 %s44, %s36
      %s77 = ssub.s32 %s26, %s40
      %s78 = ssub.s32 %s75, %s76
      %s79 = sor.u32 %s77, %s78
      %p80 = scmp.eq.s32.totalorder %s79, 0
      %s82 = sadd.s32 %s81, 1
      %s83 = scalar_select %p80, %s81, %s82
      %p86 = pneg %p80
      %p87 = scmp.eq.s32.totalorder %s18, 1
      %p88 = por %p86, %p87
      %p89 = scmp.ne.s32.totalorder %s81, %s84
      %p90 = scmp.eq.s32.totalorder %s18, 0
      %p91 = por %p89, %p90
      %p92 = scmp.ne.s32.totalorder %s81, %s84
      %p93 = scmp.eq.s32.totalorder %s23, 1
      %p94 = por %p92, %p93
      %p95 = scmp.ne.s32.totalorder %s84, %s85
      %p96 = scmp.eq.s32.totalorder %s23, 0
      %p97 = por %p95, %p96
      %p98 = scmp.ne.s32.totalorder %s84, %s85
      %p99 = scmp.eq.s32.totalorder %s24, 1
      %p100 = por %p98, %p99
      %p102 = scmp.ne.s32.totalorder %s85, %s101
      %p103 = scmp.eq.s32.totalorder %s24, 0
      %p104 = por %p102, %p103
      %s105 = ssub.s32 %s25, %s44
      %p106 = scmp.eq.s32.totalorder %s105, 0
      %s108 = sadd.s32 %s107, 1
      %s109 = scalar_select %p106, %s107, %s108
      %p112 = pneg %p106
      %p113 = scmp.eq.s32.totalorder %s18, 1
      %p114 = por %p112, %p113
      %p115 = scmp.ne.s32.totalorder %s107, %s110
      %p116 = scmp.eq.s32.totalorder %s18, 0
      %p117 = por %p115, %p116
      %p118 = scmp.ne.s32.totalorder %s107, %s110
      %p119 = scmp.eq.s32.totalorder %s23, 1
      %p120 = por %p118, %p119
      %p121 = scmp.ne.s32.totalorder %s110, %s111
      %p122 = scmp.eq.s32.totalorder %s23, 0
      %p123 = por %p121, %p122
      %p124 = scmp.ne.s32.totalorder %s110, %s111
      %p125 = scmp.eq.s32.totalorder %s24, 1
      %p126 = por %p124, %p125
      %p128 = scmp.ne.s32.totalorder %s111, %s127
      %p129 = scmp.eq.s32.totalorder %s24, 0
      %p130 = por %p128, %p129
      %s131 = ssub.s32 %s25, %s44
      %p132 = scmp.eq.s32.totalorder %s131, 0
      %s134 = sadd.s32 %s133, 1
      %s135 = scalar_select %p132, %s133, %s134
      %p138 = pneg %p132
      %p139 = scmp.eq.s32.totalorder %s18, 1
      %p140 = por %p138, %p139
      %p141 = scmp.ne.s32.totalorder %s133, %s136
      %p142 = scmp.eq.s32.totalorder %s18, 0
      %p143 = por %p141, %p142
      %p144 = scmp.ne.s32.totalorder %s133, %s136
      %p145 = scmp.eq.s32.totalorder %s23, 1
      %p146 = por %p144, %p145
      %p147 = scmp.ne.s32.totalorder %s136, %s137
      %p148 = scmp.eq.s32.totalorder %s23, 0
      %p149 = por %p147, %p148
      %p150 = scmp.ne.s32.totalorder %s136, %s137
      %p151 = scmp.eq.s32.totalorder %s24, 1
      %p152 = por %p150, %p151
      %p154 = scmp.ne.s32.totalorder %s137, %s153
      %p155 = scmp.eq.s32.totalorder %s24, 0
      %p156 = por %p154, %p155
      %p157 = scmp.le.s32.totalorder 1, %s18
      %p158 = scmp.lt.s32.totalorder %s18, 3
      %p159 = pnand %p157, %p158
      %p160 = pneg %p159
      // Predicated region
      $region9: #{tpu_custom_call.1} parent=5 // pred_check
        _
      $region10: #{tpu_custom_call.1} parent=5 // pred_check_branch
        %162 = sbr.rel (%p159) target = $region12
      $region11: #{tpu_custom_call.1} parent=5 // pred_region
        %s163 = ssub.s32 %s18, 1
      $region12: #{tpu_custom_call.1} parent=5 // pred_fallthru
        _
      %p164 = scmp.lt.s32.totalorder %s18, 2
      // Predicated region
      $region13: #{tpu_custom_call.1} parent=5 // pred_check
        %p165 = pneg %p164
      $region14: #{tpu_custom_call.1} parent=5 // pred_check_branch
        %167 = sbr.rel (%p165) target = $region16
      $region15: #{tpu_custom_call.1} parent=5 // pred_region
        // Predicated region
        $region17: #{tpu_custom_call.1} parent=15 // pred_check
          %p168 = pneg %p61
        $region18: #{tpu_custom_call.1} parent=15 // pred_check_branch
          %170 = sbr.rel (%p168) target = $region20
        $region19: #{tpu_custom_call.1} parent=15 // pred_region
          %s171 = sand.u32 %s51, 1
          %s172 = scalar_lea.sflag [#allocation3], %s171
          %s173 = sand.u32 %s51, 1
          %s174 = smul.addr %s173, 8
          %s175 = scalar_lea.vmem [#allocation2], %s174
          %s176 = sadd.s32 %s25, %s27
          %s178 = ssub.s32 128, 128
          %179 = vsyncadd %s172, %s178
          %s180 = smul.addr %s26, 4
          %s181 = sadd.s32 %s176, %s180
          %s182 = smul.addr %s181, 32
          %s183 = scalar_lea.hbm %s0, %s182
          %s184 = sshll.u32 %s175, 4
          %s185 = int_to_ptr.vmem [resolvable:$true] %s184
          %190 = dma.hbm_to_vmem [thread:$0]  %s183, 128, %s185, %s172, 32, 32, 2
        $region20: #{tpu_custom_call.1} parent=15 // pred_fallthru
          _
        // Predicated region
        $region21: #{tpu_custom_call.1} parent=15 // pred_check
          %p191 = pneg %p91
        $region22: #{tpu_custom_call.1} parent=15 // pred_check_branch
          %193 = sbr.rel (%p191) target = $region24
        $region23: #{tpu_custom_call.1} parent=15 // pred_region
          %s194 = sand.u32 %s81, 1
          %s195 = scalar_lea.sflag [#allocation6], %s194
          %s196 = sand.u32 %s81, 1
          %s197 = smul.addr %s196, 2
          %s198 = scalar_lea.vmem [#allocation5], %s197
          %s199 = sadd.s32 %s25, %s27
          %s201 = ssub.s32 32, 32
          %202 = vsyncadd %s195, %s201
          %s203 = sadd.s32 %s199, %s26
          %s204 = smul.addr %s203, 32
          %s205 = scalar_lea.hbm %s1, %s204
          %s207 = sshll.u32 %s198, 4
          %s208 = int_to_ptr.vmem [resolvable:$true] %s207
          %210 = dma.hbm_to_vmem [thread:$0]  %s205, 32, %s208, %s195
        $region24: #{tpu_custom_call.1} parent=15 // pred_fallthru
          _
      $region16: #{tpu_custom_call.1} parent=5 // pred_fallthru
        _
      %p211 = scmp.le.s32.totalorder 1, %s18
      %p212 = scmp.lt.s32.totalorder %s18, 3
      %p213 = pnand %p211, %p212
      %p214 = pneg %p213
      // Predicated region
      $region25: #{tpu_custom_call.1} parent=5 // pred_check
        _
      $region26: #{tpu_custom_call.1} parent=5 // pred_check_branch
        %216 = sbr.rel (%p213) target = $region28
      $region27: #{tpu_custom_call.1} parent=5 // pred_region
        %s217 = ssub.s32 %s18, 1
        %s218 = sand.u32 %s54, 1
        %s219 = scalar_lea.sflag [#allocation3], %s218
        %s220 = sand.u32 %s54, 1
        %s221 = smul.addr %s220, 8
        %s222 = scalar_lea.vmem [#allocation2], %s221
        // Predicated region
        $region29: #{tpu_custom_call.1} parent=27 // pred_check
          %p223 = pneg %p67
        $region30: #{tpu_custom_call.1} parent=27 // pred_check_branch
          %225 = sbr.rel (%p223) target = $region32
        $region31: #{tpu_custom_call.1} parent=27 // pred_region
          %226 = dma.done %s219, 128
        $region32: #{tpu_custom_call.1} parent=27 // pred_fallthru
          _
        %s227 = sand.u32 %s84, 1
        %s228 = scalar_lea.sflag [#allocation6], %s227
        %s229 = sand.u32 %s84, 1
        %s230 = smul.addr %s229, 2
        %s231 = scalar_lea.vmem [#allocation5], %s230
        // Predicated region
        $region33: #{tpu_custom_call.1} parent=27 // pred_check
          %p232 = pneg %p97
        $region34: #{tpu_custom_call.1} parent=27 // pred_check_branch
          %234 = sbr.rel (%p232) target = $region36
        $region35: #{tpu_custom_call.1} parent=27 // pred_region
          %235 = dma.done %s228, 32
        $region36: #{tpu_custom_call.1} parent=27 // pred_fallthru
          _
        %s236 = sand.u32 %s54, 1
        %s237 = scalar_lea.sflag [#allocation3], %s236
        %s238 = sand.u32 %s54, 1
        %s239 = smul.addr %s238, 8
        %s240 = scalar_lea.vmem [#allocation2], %s239
        %p241 = pneg %p67
        %p242 = pneg %p64
        %s243 = sand.u32 %s84, 1
        %s244 = scalar_lea.sflag [#allocation6], %s243
        %s245 = sand.u32 %s84, 1
        %s246 = smul.addr %s245, 2
        %s247 = scalar_lea.vmem [#allocation5], %s246
        %p248 = pneg %p97
        %p249 = pneg %p94
        %p250 = pneg %p123
        %p251 = pneg %p120
        %p252 = pneg %p149
        %p253 = pneg %p146
        %s254 = sadd.s32 %s28, %s30
        %s255 = sadd.s32 %s28, %s30
        %p256 = scmp.eq.s32.totalorder %s29, 0
        %p257 = scmp.eq.s32.totalorder %s30, 0
        %p258 = pnand %p256, %p257
        %p259 = pneg %p258
        // Predicated region
        $region37: #{tpu_custom_call.1} parent=27 // pred_check
          _
        $region38: #{tpu_custom_call.1} parent=27 // pred_check_branch
          %261 = sbr.rel (%p258) target = $region40
        $region39: #{tpu_custom_call.1} parent=27 // pred_region
          %262 = vst [vmem:[#allocation7] sm:$0x3] 0.0
          %263 = vst [vmem:[#allocation8] sm:$0x3] 0.0
        $region40: #{tpu_custom_call.1} parent=27 // pred_fallthru
          _
        %v264 = vld [vmem:[%s222] sm:$0x3]
        %v265 = vld [vmem:[%s222 + $0x2] sm:$0x3]
        %v266 = vld [vmem:[%s222 + $0x4] sm:$0x3]
        %v267 = vld [vmem:[%s222 + $0x6] sm:$0x3]
        %v268 = vld [vmem:[%s231] sm:$0x3]
        %vm269 = vcmask 1041408
        %v270 = vsel %vm269, %v264, -inf
        %v271 = vsel %vm269, %v265, -inf
        %v272 = vsel %vm269, %v266, -inf
        %v273 = vsel %vm269, %v267, -inf
        %v274 = vmax.f32 %v270, %v271
        %v275 = vmax.f32 %v272, %v273
        %v276 = vmax.f32 %v274, %v275
        %v277 = vsub.f32 %v264, %v276
        %v278 = vsub.f32 %v265, %v276
        %v279 = vsub.f32 %v266, %v276
        %v280 = vsub.f32 %v267, %v276
        %v281 = vmul.f32 %v277, 1.442695
        %v282 = vpow.pop %v281
        %v283 = vmul.f32 %v278, 1.442695
        %v284 = vpow.pop %v283
        %v285 = vmul.f32 %v279, 1.442695
        %v286 = vpow.pop %v285
        %v287 = vmul.f32 %v280, 1.442695
        %v288 = vpow.pop %v287
        %v289 = vsel %vm269, %v282, 0.0
        %v290 = vsel %vm269, %v284, 0.0
        %v291 = vadd.f32 %v289, %v290
        %v292 = vsel %vm269, %v286, 0.0
        %v293 = vadd.f32 %v291, %v292
        %v294 = vsel %vm269, %v288, 0.0
        %v295 = vadd.f32 %v293, %v294
        %vm296 = vcmp.eq.s32.totalorder %v268, 0
        %vm297 = vcmp.eq.s32.totalorder %v268, 1
        %vm298 = vcmp.eq.s32.totalorder %v268, 2
        %vm299 = vcmp.eq.s32.totalorder %v268, 3
        %v300 = vsel %vm296, %v264, 0.0
        %v301 = vsel %vm297, %v265, 0.0
        %v302 = vsel %vm298, %v266, 0.0
        %v303 = vsel %vm299, %v267, 0.0
        %v304 = vsel %vm269, %v300, 0.0
        %v305 = vsel %vm269, %v301, 0.0
        %v306 = vadd.f32 %v304, %v305
        %v307 = vsel %vm269, %v302, 0.0
        %v308 = vadd.f32 %v306, %v307
        %v309 = vsel %vm269, %v303, 0.0
        %v310 = vadd.f32 %v308, %v309
        %v311 = vsel %vm296, %v282, 0.0
        %v312 = vsel %vm297, %v284, 0.0
        %v313 = vsel %vm298, %v286, 0.0
        %v314 = vsel %vm299, %v288, 0.0
        %v315 = vsel %vm269, %v311, 0.0
        %v316 = vsel %vm269, %v312, 0.0
        %v317 = vadd.f32 %v315, %v316
        %v318 = vsel %vm269, %v313, 0.0
        %v319 = vadd.f32 %v317, %v318
        %v320 = vsel %vm269, %v314, 0.0
        %v321 = vadd.f32 %v319, %v320
        %vm322 = vcmp.ne.s32.totalorder %v268, 4294967196
        %v323 = vlog2.pop %v295
        %v324 = vmul.f32 %v323, 0.6931472
        %v325 = vsub.f32 %v276, %v310
        %v326 = vadd.f32 %v324, %v325
        %v327 = vrcp.pop %v295
        %v328 = vmul.f32 %v321, %v327
        %v329 = vsub.f32 1.0, %v328
        %v330 = vmul.f32 %v329, %v329
        %v331 = vmul.f32 %v330, 0.25
        %v332 = vmul.f32 %v331, %v326
        %v333 = vsel %vm322, %v332, 0.0
        %v334 = vld [vmem:[#allocation7] sm:$0x3]
        %v335 = vadd.f32 %v334, %v333
        %336 = vst [vmem:[#allocation7] sm:$0x3] %v335
        %v337 = vld [vmem:[#allocation8] sm:$0x3]
        %v338 = vsel %vm322, 1, 0
        %v339 = vcvt.s32.f32 %v338
        %v340 = vadd.f32 %v337, %v339
        %341 = vst [vmem:[#allocation8] sm:$0x3] %v340
        // Predicated region
        $region41: #{tpu_custom_call.1} parent=27 // pred_check
          %p342 = pneg %p120
        $region42: #{tpu_custom_call.1} parent=27 // pred_check_branch
          %344 = sbr.rel (%p342) target = $region44
        $region43: #{tpu_custom_call.1} parent=27 // pred_region
          %s346 = ssub.s32 32, 32
          %347 = vsyncadd [#allocation4], %s346
          %s348 = smul.addr %s28, 32
          %s349 = scalar_lea.hbm %s2, %s348
          %s351 = sshll.u32 [#allocation7], 4
          %s352 = int_to_ptr.vmem [resolvable:$true] %s351
          %354 = dma.vmem_to_hbm [thread:$0]  %s352, 32, %s349, [#allocation4]
        $region44: #{tpu_custom_call.1} parent=27 // pred_fallthru
          _
        // Predicated region
        $region45: #{tpu_custom_call.1} parent=27 // pred_check
          %p355 = pneg %p146
        $region46: #{tpu_custom_call.1} parent=27 // pred_check_branch
          %357 = sbr.rel (%p355) target = $region48
        $region47: #{tpu_custom_call.1} parent=27 // pred_region
          %s359 = ssub.s32 32, 32
          %360 = vsyncadd [#allocation9], %s359
          %s361 = smul.addr %s28, 32
          %s362 = scalar_lea.hbm %s3, %s361
          %s364 = sshll.u32 [#allocation8], 4
          %s365 = int_to_ptr.vmem [resolvable:$true] %s364
          %367 = dma.vmem_to_hbm [thread:$0]  %s365, 32, %s362, [#allocation9]
        $region48: #{tpu_custom_call.1} parent=27 // pred_fallthru
          _
        // Predicated region
        $region49: #{tpu_custom_call.1} parent=27 // pred_check
          %p368 = pneg %p120
        $region50: #{tpu_custom_call.1} parent=27 // pred_check_branch
          %370 = sbr.rel (%p368) target = $region52
        $region51: #{tpu_custom_call.1} parent=27 // pred_region
          %371 = dma.done [#allocation4], 32
        $region52: #{tpu_custom_call.1} parent=27 // pred_fallthru
          _
        // Predicated region
        $region53: #{tpu_custom_call.1} parent=27 // pred_check
          %p372 = pneg %p146
        $region54: #{tpu_custom_call.1} parent=27 // pred_check_branch
          %374 = sbr.rel (%p372) target = $region56
        $region55: #{tpu_custom_call.1} parent=27 // pred_region
          %375 = dma.done [#allocation9], 32
        $region56: #{tpu_custom_call.1} parent=27 // pred_fallthru
          _
      $region28: #{tpu_custom_call.1} parent=5 // pred_fallthru
        _
      %p376 = scmp.le.s32.totalorder 2, %s18
      // Predicated region
      $region57: #{tpu_custom_call.1} parent=5 // pred_check
        %p377 = pneg %p376
      $region58: #{tpu_custom_call.1} parent=5 // pred_check_branch
        %379 = sbr.rel (%p377) target = $region60
      $region59: #{tpu_custom_call.1} parent=5 // pred_region
        %s380 = ssub.s32 %s18, 2
      $region60: #{tpu_custom_call.1} parent=5 // pred_fallthru
        _
    $region6: #{tpu_custom_call.1} parent=1 // loop_footer
      %s22 = sadd.s32 1, %s18
    $region7: #{tpu_custom_call.1} parent=1 // loop_footer_branch
      %17 = sbr.rel target = $region3
    $region8: #{tpu_custom_call.1} parent=1 // loop_exit
      _
    %381 = vsyncpa [#allocation3], 1
    %s382 = scalar_lea.sflag [#allocation3], 1
    %383 = vsyncpa %s382, 1
    %384 = vsyncpa [#allocation6], 1
    %s385 = scalar_lea.sflag [#allocation6], 1
    %386 = vsyncpa %s385, 1
    %387 = vsyncpa [#allocation4], 1
    %s388 = scalar_lea.sflag [#allocation4], 1
    %389 = vsyncpa %s388, 1
    %390 = vsyncpa [#allocation9], 1

</llo_original>
